<compile_context>
chip_gen: v7x
topology: tpu7x:2x2x1
jax: 0.10.0
libtpu: 0.0.40
codegen_flags: <defaults>
</compile_context>

<pallas_src>
import functools

import jax
import jax.numpy as jnp
from jax.experimental import pallas as pl
from jax.experimental.pallas import tpu as pltpu


# ----------------------------------------------------------------------------
# helpers
# ----------------------------------------------------------------------------
def _round_up(x, m):
    return ((x + m - 1) // m) * m


def _pad2(x, rows, cols):
    r, c = x.shape
    return jnp.pad(x, ((0, rows - r), (0, cols - c)))


def _choose_tile_n(n_nodes):
    """Row-block size: keep double-buffered bf16 (tile_n, N) A blocks <= ~20 MiB."""
    budget = 20 * 1024 * 1024
    per_row = 2 * 2 * max(n_nodes, 1)        # 2 buffers * 2 bytes * N columns
    t = budget // per_row
    t = int(max(8, min(1024, (t // 8) * 8)))
    if t >= n_nodes:                         # whole graph fits in one row block
        return max(8, _round_up(n_nodes, 8))
    if t >= 128:
        t = (t // 128) * 128                 # sublane/lane friendly tiles
    return t


_VMEM_LIMIT = 48 * 1024 * 1024  # > 16/32 MiB scoped defaults, < 64 MiB v7x physical


# ----------------------------------------------------------------------------
# Pallas kernels
# ----------------------------------------------------------------------------
def gcn_layer1_kernel(a_ref, x_ref, w1_ref, b1_ref, w2_ref, o_ref):
    """o_tile = relu((A_tile @ X) @ W1 + b1) @ W2  (layer 1 + layer-2 transform)."""
    ax = jnp.dot(a_ref[...], x_ref[...], preferred_element_type=jnp.float32)
    h = jnp.dot(ax.astype(jnp.bfloat16), w1_ref[...],
                preferred_element_type=jnp.float32)
    h = jnp.maximum(h + b1_ref[...], 0.0)          # bias + relu in f32
    # F.dropout(p, training=False) -> identity at inference.
    # TODO(synk): training-mode dropout (pltpu.prng_random_bits mask) not wired in.
    o_ref[...] = jnp.dot(h.astype(jnp.bfloat16), w2_ref[...],
                         preferred_element_type=jnp.float32).astype(o_ref.dtype)


def gcn_layer2_kernel(a_ref, xw_ref, b_ref, o_ref, *, num_classes):
    """o_tile = log_softmax(A_tile @ XW2 + b2) over the first `num_classes` lanes."""
    out = jnp.dot(a_ref[...], xw_ref[...], preferred_element_type=jnp.float32)
    out = out + b_ref[...]
    col = jax.lax.broadcasted_iota(jnp.int32, out.shape, 1)
    valid = col < num_classes                      # exclude padded class lanes
    masked = jnp.where(valid, out, jnp.float32(-1e30))
    m = jnp.max(masked, axis=1, keepdims=True)
    e = jnp.where(valid, jnp.exp(out - m), 0.0)
    lse = jnp.log(jnp.sum(e, axis=1, keepdims=True))
    o_ref[...] = (out - m - lse).astype(o_ref.dtype)


# ----------------------------------------------------------------------------
# pallas_call wrappers (row-block tiled over A_hat; everything else resident)
# ----------------------------------------------------------------------------
def _layer1_call(a_p, x_p, w1_p, b1_p, w2_p, *, tile_n):
    n_pad = a_p.shape[0]
    f_pad = x_p.shape[1]
    h_pad = w1_p.shape[1]
    c_pad = w2_p.shape[1]
    grid = (n_pad // tile_n,)
    return pl.pallas_call(
        gcn_layer1_kernel,
        out_shape=jax.ShapeDtypeStruct((n_pad, c_pad), jnp.bfloat16),
        grid_spec=pltpu.PrefetchScalarGridSpec(
            num_scalar_prefetch=0,
            grid=grid,
            in_specs=[
                pl.BlockSpec((tile_n, n_pad), lambda i: (i, 0)),   # A_hat row block
                pl.BlockSpec((n_pad, f_pad), lambda i: (0, 0)),    # X (resident)
                pl.BlockSpec((f_pad, h_pad), lambda i: (0, 0)),    # W1 (resident)
                pl.BlockSpec((1, h_pad), lambda i: (0, 0)),        # b1
                pl.BlockSpec((h_pad, c_pad), lambda i: (0, 0)),    # W2 (resident)
            ],
            out_specs=pl.BlockSpec((tile_n, c_pad), lambda i: (i, 0)),
        ),
        compiler_params=pltpu.CompilerParams(
            dimension_semantics=("parallel",),
            vmem_limit_bytes=_VMEM_LIMIT),
    )(a_p, x_p, w1_p, b1_p, w2_p)


def _layer2_call(a_p, xw2, b2_p, *, num_classes, tile_n):
    n_pad = a_p.shape[0]
    c_pad = xw2.shape[1]
    grid = (n_pad // tile_n,)
    return pl.pallas_call(
        functools.partial(gcn_layer2_kernel, num_classes=num_classes),
        out_shape=jax.ShapeDtypeStruct((n_pad, c_pad), jnp.float32),
        grid_spec=pltpu.PrefetchScalarGridSpec(
            num_scalar_prefetch=0,
            grid=grid,
            in_specs=[
                pl.BlockSpec((tile_n, n_pad), lambda i: (i, 0)),   # A_hat row block
                pl.BlockSpec((n_pad, c_pad), lambda i: (0, 0)),    # XW2 (resident)
                pl.BlockSpec((1, c_pad), lambda i: (0, 0)),        # b2
            ],
            out_specs=pl.BlockSpec((tile_n, c_pad), lambda i: (i, 0)),
        ),
        compiler_params=pltpu.CompilerParams(
            dimension_semantics=("parallel",),
            vmem_limit_bytes=_VMEM_LIMIT),
    )(a_p, xw2, b2_p)


# ----------------------------------------------------------------------------
# Plain-JAX glue
# ----------------------------------------------------------------------------
def build_norm_adj(edge_index, num_nodes):
    """A_hat = D^-1/2 (A + I) D^-1/2 from a (2, E) int edge_index (src, dst).

    Matches PyG gcn_norm semantics: duplicate edges are scatter-ADDED, existing
    self-loops are replaced by weight-1 self-loops.  Returned as bf16 (MXU
    stream); accumulation inside the kernels is f32.
    """
    src, dst = edge_index[0], edge_index[1]
    w = jnp.where(src == dst, 0.0, 1.0).astype(jnp.float32)  # drop existing self-loops
    adj = jnp.zeros((num_nodes, num_nodes), jnp.float32)
    adj = adj.at[dst, src].add(w)                            # scatter-add (duplicates count)
    adj = adj + jnp.eye(num_nodes, dtype=jnp.float32)        # add_remaining_self_loops(fill=1)
    deg = jnp.sum(adj, axis=1)
    d_inv_sqrt = jnp.where(deg > 0, jax.lax.rsqrt(deg), 0.0)
    a_hat = d_inv_sqrt[:, None] * adj * d_inv_sqrt[None, :]
    return a_hat.astype(jnp.bfloat16)


def glorot(key, shape):
    fan_in, fan_out = shape
    limit = jnp.sqrt(6.0 / (fan_in + fan_out))
    return jax.random.uniform(key, shape, jnp.float32, -limit, limit)


def gcn_net_forward(x, a_hat, params):
    """Inference forward matching GCN_Net.forward (dropout is identity)."""
    n, f_in = x.shape
    hidden = params["w1"].shape[1]
    n_cls = params["w2"].shape[1]

    tile_n = _choose_tile_n(n)
    n_pad = _round_up(n, tile_n)
    f_pad = _round_up(f_in, 128)
    h_pad = _round_up(hidden, 128)
    c_pad = _round_up(n_cls, 128)

    # Lane-dense, zero-padded operands (bf16 for the MXU, f32 biases).
    a_p = _pad2(a_hat.astype(jnp.bfloat16), n_pad, n_pad)
    x_p = _pad2(x, n_pad, f_pad).astype(jnp.bfloat16)
    w1_p = _pad2(params["w1"], f_pad, h_pad).astype(jnp.bfloat16)
    b1_p = _pad2(params["b1"].reshape(1, -1), 1, h_pad).astype(jnp.float32)
    w2_p = _pad2(params["w2"], h_pad, c_pad).astype(jnp.bfloat16)
    b2_p = _pad2(params["b2"].reshape(1, -1), 1, c_pad).astype(jnp.float32)

    # layer 1 (+ relu) fused with layer-2 feature transform -> XW2 (never hits HBM as H1)
    xw2 = _layer1_call(a_p, x_p, w1_p, b1_p, w2_p, tile_n=tile_n)
    # layer 2 aggregation + bias + masked log_softmax
    out = _layer2_call(a_p, xw2, b2_p, num_classes=n_cls, tile_n=tile_n)
    return out[:n, :n_cls]


# ----------------------------------------------------------------------------
if __name__ == "__main__":
    # small synthetic graph: N nodes, F input features, H hidden, C classes
    N, F_IN, HIDDEN, CLASSES = 128, 16, 32, 8
    NUM_EDGES = 512

    key = jax.random.PRNGKey(0)
    k_x, k_e, k_w1, k_w2 = jax.random.split(key, 4)

    x = jax.random.normal(k_x, (N, F_IN), jnp.float32)
    edge_index = jax.random.randint(k_e, (2, NUM_EDGES), 0, N, jnp.int32)

    params = {
        "w1": glorot(k_w1, (F_IN, HIDDEN)),
        "b1": jnp.zeros((1, HIDDEN), jnp.float32),
        "w2": glorot(k_w2, (HIDDEN, CLASSES)),
        "b2": jnp.zeros((1, CLASSES), jnp.float32),
    }

    # A_hat is static per graph: build once outside the jit and reuse.
    a_hat = build_norm_adj(edge_index, N)

    forward = jax.jit(gcn_net_forward)
    out = forward(x, a_hat, params)
    out = jax.block_until_ready(out)

    assert out.shape == (N, CLASSES)
    # rows of log_softmax must (log-)normalize to ~0
    row_lse = jax.scipy.special.logsumexp(out.astype(jnp.float32), axis=1)
    assert jnp.max(jnp.abs(row_lse)) < 1e-4

    print("KERNEL_OK")
</pallas_src>

<mosaic_0001>
module attributes {stable_mosaic.version = 11 : i64} {
  func.func @gcn_layer1_kernel(%arg0: i32, %arg1: memref<128x128xbf16, #tpu.memory_space<vmem>>, %arg2: memref<128x128xbf16, #tpu.memory_space<vmem>>, %arg3: memref<128x128xbf16, #tpu.memory_space<vmem>>, %arg4: memref<1x128xf32, #tpu.memory_space<vmem>>, %arg5: memref<128x128xbf16, #tpu.memory_space<vmem>>, %arg6: memref<128x128xbf16, #tpu.memory_space<vmem>>) attributes {dimension_semantics = [#tpu.dimension_semantics<parallel>], iteration_bounds = array<i64: 1>, scalar_prefetch = 0 : i64, scratch_operands = 0 : i64, tpu.core_type = #tpu.core_type<tc>, window_params = [{transform_indices = @transform_0, window_bounds = array<i64: 128, 128>}, {pipeline_mode = #tpu.pipeline_mode<synchronous>, transform_indices = @transform_1, window_bounds = array<i64: 128, 128>}, {pipeline_mode = #tpu.pipeline_mode<synchronous>, transform_indices = @transform_2, window_bounds = array<i64: 128, 128>}, {pipeline_mode = #tpu.pipeline_mode<synchronous>, transform_indices = @transform_3, window_bounds = array<i64: 1, 128>}, {pipeline_mode = #tpu.pipeline_mode<synchronous>, transform_indices = @transform_4, window_bounds = array<i64: 128, 128>}, {transform_indices = @transform_5, window_bounds = array<i64: 128, 128>}]} {
    %c0 = arith.constant 0 : index
    %c0_0 = arith.constant 0 : index
    %0 = vector.load %arg1[%c0, %c0_0] : memref<128x128xbf16, #tpu.memory_space<vmem>>, vector<128x128xbf16>
    %c0_1 = arith.constant 0 : index
    %c0_2 = arith.constant 0 : index
    %1 = vector.load %arg2[%c0_1, %c0_2] : memref<128x128xbf16, #tpu.memory_space<vmem>>, vector<128x128xbf16>
    %cst = arith.constant dense<0.000000e+00> : vector<128x128xf32>
    %2 = tpu.matmul %0, %1, %cst {dimension_numbers = #tpu.dot_dimension_numbers<[1], [0], [0], [1], [0, 0, 1, 1], [], []>} : vector<128x128xbf16>, vector<128x128xbf16>, vector<128x128xf32> -> vector<128x128xf32>
    %3 = arith.truncf %2 : vector<128x128xf32> to vector<128x128xbf16>
    %c0_3 = arith.constant 0 : index
    %c0_4 = arith.constant 0 : index
    %4 = vector.load %arg3[%c0_3, %c0_4] : memref<128x128xbf16, #tpu.memory_space<vmem>>, vector<128x128xbf16>
    %cst_5 = arith.constant dense<0.000000e+00> : vector<128x128xf32>
    %5 = tpu.matmul %3, %4, %cst_5 {dimension_numbers = #tpu.dot_dimension_numbers<[1], [0], [0], [1], [0, 0, 1, 1], [], []>} : vector<128x128xbf16>, vector<128x128xbf16>, vector<128x128xf32> -> vector<128x128xf32>
    %c0_6 = arith.constant 0 : index
    %c0_7 = arith.constant 0 : index
    %6 = vector.load %arg4[%c0_6, %c0_7] : memref<1x128xf32, #tpu.memory_space<vmem>>, vector<1x128xf32>
    %7 = vector.broadcast %6 : vector<1x128xf32> to vector<128x128xf32>
    %8 = arith.addf %5, %7 : vector<128x128xf32>
    %cst_8 = arith.constant 0.000000e+00 : f32
    %9 = vector.broadcast %cst_8 : f32 to vector<128x128xf32>
    %10 = arith.maximumf %8, %9 : vector<128x128xf32>
    %11 = arith.truncf %10 : vector<128x128xf32> to vector<128x128xbf16>
    %c0_9 = arith.constant 0 : index
    %c0_10 = arith.constant 0 : index
    %12 = vector.load %arg5[%c0_9, %c0_10] : memref<128x128xbf16, #tpu.memory_space<vmem>>, vector<128x128xbf16>
    %cst_11 = arith.constant dense<0.000000e+00> : vector<128x128xf32>
    %13 = tpu.matmul %11, %12, %cst_11 {dimension_numbers = #tpu.dot_dimension_numbers<[1], [0], [0], [1], [0, 0, 1, 1], [], []>} : vector<128x128xbf16>, vector<128x128xbf16>, vector<128x128xf32> -> vector<128x128xf32>
    %14 = arith.truncf %13 : vector<128x128xf32> to vector<128x128xbf16>
    %c0_12 = arith.constant 0 : index
    %c0_13 = arith.constant 0 : index
    %15 = vector.load %arg6[%c0_12, %c0_13] : memref<128x128xbf16, #tpu.memory_space<vmem>>, vector<128x128xbf16>
    tpu.vector_store %arg6[%c0_12, %c0_13], %14 {strides = array<i32>} : memref<128x128xbf16, #tpu.memory_space<vmem>>, vector<128x128xbf16>,
    return
  }
  func.func @transform_0(%arg0: i32) -> (i32, i32) {
    %c0_i32 = arith.constant 0 : i32
    %c0_i32_0 = arith.constant 0 : i32
    return %arg0, %c0_i32 : i32, i32
  }
  func.func @transform_1(%arg0: i32) -> (i32, i32) {
    %c0_i32 = arith.constant 0 : i32
    %c0_i32_0 = arith.constant 0 : i32
    %c0_i32_1 = arith.constant 0 : i32
    return %c0_i32, %c0_i32_0 : i32, i32
  }
  func.func @transform_2(%arg0: i32) -> (i32, i32) {
    %c0_i32 = arith.constant 0 : i32
    %c0_i32_0 = arith.constant 0 : i32
    %c0_i32_1 = arith.constant 0 : i32
    return %c0_i32, %c0_i32_0 : i32, i32
  }
  func.func @transform_3(%arg0: i32) -> (i32, i32) {
    %c0_i32 = arith.constant 0 : i32
    %c0_i32_0 = arith.constant 0 : i32
    %c0_i32_1 = arith.constant 0 : i32
    return %c0_i32, %c0_i32_0 : i32, i32
  }
  func.func @transform_4(%arg0: i32) -> (i32, i32) {
    %c0_i32 = arith.constant 0 : i32
    %c0_i32_0 = arith.constant 0 : i32
    %c0_i32_1 = arith.constant 0 : i32
    return %c0_i32, %c0_i32_0 : i32, i32
  }
  func.func @transform_5(%arg0: i32) -> (i32, i32) {
    %c0_i32 = arith.constant 0 : i32
    %c0_i32_0 = arith.constant 0 : i32
    return %arg0, %c0_i32 : i32, i32
  }
}

module attributes {stable_mosaic.version = 11 : i64} {
  func.func @gcn_layer2_kernel(%arg0: i32, %arg1: memref<128x128xbf16, #tpu.memory_space<vmem>>, %arg2: memref<128x128xbf16, #tpu.memory_space<vmem>>, %arg3: memref<1x128xf32, #tpu.memory_space<vmem>>, %arg4: memref<128x128xf32, #tpu.memory_space<vmem>>) attributes {dimension_semantics = [#tpu.dimension_semantics<parallel>], iteration_bounds = array<i64: 1>, scalar_prefetch = 0 : i64, scratch_operands = 0 : i64, tpu.core_type = #tpu.core_type<tc>, window_params = [{transform_indices = @transform_0, window_bounds = array<i64: 128, 128>}, {pipeline_mode = #tpu.pipeline_mode<synchronous>, transform_indices = @transform_1, window_bounds = array<i64: 128, 128>}, {pipeline_mode = #tpu.pipeline_mode<synchronous>, transform_indices = @transform_2, window_bounds = array<i64: 1, 128>}, {transform_indices = @transform_3, window_bounds = array<i64: 128, 128>}]} {
    %c0 = arith.constant 0 : index
    %c0_0 = arith.constant 0 : index
    %0 = vector.load %arg1[%c0, %c0_0] : memref<128x128xbf16, #tpu.memory_space<vmem>>, vector<128x128xbf16>
    %c0_1 = arith.constant 0 : index
    %c0_2 = arith.constant 0 : index
    %1 = vector.load %arg2[%c0_1, %c0_2] : memref<128x128xbf16, #tpu.memory_space<vmem>>, vector<128x128xbf16>
    %cst = arith.constant dense<0.000000e+00> : vector<128x128xf32>
    %2 = tpu.matmul %0, %1, %cst {dimension_numbers = #tpu.dot_dimension_numbers<[1], [0], [0], [1], [0, 0, 1, 1], [], []>} : vector<128x128xbf16>, vector<128x128xbf16>, vector<128x128xf32> -> vector<128x128xf32>
    %c0_3 = arith.constant 0 : index
    %c0_4 = arith.constant 0 : index
    %3 = vector.load %arg3[%c0_3, %c0_4] : memref<1x128xf32, #tpu.memory_space<vmem>>, vector<1x128xf32>
    %4 = vector.broadcast %3 : vector<1x128xf32> to vector<128x128xf32>
    %5 = arith.addf %2, %4 : vector<128x128xf32>
    %6 = tpu.iota {dimensions = array<i32: 1>} : vector<128x128xi32>
    %c8_i32 = arith.constant 8 : i32
    %7 = vector.broadcast %c8_i32 : i32 to vector<128x128xi32>
    %8 = arith.cmpi slt, %6, %7 : vector<128x128xi32>
    %cst_5 = arith.constant -1.000000e+30 : f32
    %9 = vector.broadcast %cst_5 : f32 to vector<128x128xf32>
    %10 = arith.select %8, %5, %9 : vector<128x128xi1>, vector<128x128xf32>
    %cst_6 = arith.constant dense<0xFF800000> : vector<128xf32>
    %11 = vector.multi_reduction <maximumf>, %10, %cst_6 [1] : vector<128x128xf32> to vector<128xf32>
    %12 = vector.shape_cast %11 : vector<128xf32> to vector<128x1xf32>
    %13 = vector.broadcast %12 : vector<128x1xf32> to vector<128x128xf32>
    %14 = arith.subf %5, %13 : vector<128x128xf32>
    %15 = math.exp %14 : vector<128x128xf32>
    %cst_7 = arith.constant 0.000000e+00 : f32
    %16 = vector.broadcast %cst_7 : f32 to vector<128x128xf32>
    %17 = arith.select %8, %15, %16 : vector<128x128xi1>, vector<128x128xf32>
    %cst_8 = arith.constant dense<0.000000e+00> : vector<128xf32>
    %18 = vector.multi_reduction <add>, %17, %cst_8 [1] : vector<128x128xf32> to vector<128xf32>
    %19 = vector.shape_cast %18 : vector<128xf32> to vector<128x1xf32>
    %20 = math.log %19 : vector<128x1xf32>
    %21 = vector.broadcast %12 : vector<128x1xf32> to vector<128x128xf32>
    %22 = arith.subf %5, %21 : vector<128x128xf32>
    %23 = vector.broadcast %20 : vector<128x1xf32> to vector<128x128xf32>
    %24 = arith.subf %22, %23 : vector<128x128xf32>
    %c0_9 = arith.constant 0 : index
    %c0_10 = arith.constant 0 : index
    %25 = vector.load %arg4[%c0_9, %c0_10] : memref<128x128xf32, #tpu.memory_space<vmem>>, vector<128x128xf32>
    tpu.vector_store %arg4[%c0_9, %c0_10], %24 {strides = array<i32>} : memref<128x128xf32, #tpu.memory_space<vmem>>, vector<128x128xf32>,
    return
  }
  func.func @transform_0(%arg0: i32) -> (i32, i32) {
    %c0_i32 = arith.constant 0 : i32
    %c0_i32_0 = arith.constant 0 : i32
    return %arg0, %c0_i32 : i32, i32
  }
  func.func @transform_1(%arg0: i32) -> (i32, i32) {
    %c0_i32 = arith.constant 0 : i32
    %c0_i32_0 = arith.constant 0 : i32
    %c0_i32_1 = arith.constant 0 : i32
    return %c0_i32, %c0_i32_0 : i32, i32
  }
  func.func @transform_2(%arg0: i32) -> (i32, i32) {
    %c0_i32 = arith.constant 0 : i32
    %c0_i32_0 = arith.constant 0 : i32
    %c0_i32_1 = arith.constant 0 : i32
    return %c0_i32, %c0_i32_0 : i32, i32
  }
  func.func @transform_3(%arg0: i32) -> (i32, i32) {
    %c0_i32 = arith.constant 0 : i32
    %c0_i32_0 = arith.constant 0 : i32
    return %arg0, %c0_i32 : i32, i32
  }
}

</mosaic_0001>

<llo_original>
// kernel: gcn_net_forward.3
$region0: #{gcn_net_forward.3}
  #allocation0 [shape = 'u32[]', space=smem, size = 0x4, offset = 0x4, fixed_abs, tag = 'smem constant byte address 0x4 - core index']
  #allocation1 [shape = 'u32[144,128]{1,0:T(1,128)}', space=vmem, size = 0x12000, scoped, tag = 'internal scratch']
  %s0 = inlined_call_operand.vmem [shape: bf16[128,128], index: 0, kind: input, shape index: {}]
  %s1 = inlined_call_operand.vmem [shape: bf16[128,128], index: 1, kind: input, shape index: {}]
  %s2 = inlined_call_operand.vmem [shape: f32[1,128], index: 2, kind: input, shape index: {}]
  %s3 = inlined_call_operand.vmem [shape: f32[128,128], index: 3, kind: output, shape index: {}]
  %s4 = sld [smem:[#allocation0]]
  $region22: #{gcn_net_forward.3} parent=0
    _
  %s6 = ssub.s32 1, %s4
  %s7 = scalar_select 0, %s6, %s4
  // Predicated region
  $region2: #{gcn_net_forward.3} parent=0 // pred_check
    _
  $region3: #{gcn_net_forward.3} parent=0 // pred_check_branch
    %9 = sbr.rel (0) target = $region5
  $region4: #{gcn_net_forward.3} parent=0 // pred_region
    _
  $region5: #{gcn_net_forward.3} parent=0 // pred_fallthru
    _
  // Predicated region
  $region6: #{gcn_net_forward.3} parent=0 // pred_check
    _
  $region7: #{gcn_net_forward.3} parent=0 // pred_check_branch
    %11 = sbr.rel (0) target = $region9
  $region8: #{gcn_net_forward.3} parent=0 // pred_region
    _
  $region9: #{gcn_net_forward.3} parent=0 // pred_fallthru
    _
  // Predicated region
  $region10: #{gcn_net_forward.3} parent=0 // pred_check
    _
  $region11: #{gcn_net_forward.3} parent=0 // pred_check_branch
    %13 = sbr.rel (0) target = $region13
  $region12: #{gcn_net_forward.3} parent=0 // pred_region
    _
  $region13: #{gcn_net_forward.3} parent=0 // pred_fallthru
    _
  %v15 = vld [vmem:[%s0] sm:$0xf]
  %v16 = vld [vmem:[%s0 + $0x4] sm:$0xf]
  %v17 = vld [vmem:[%s0 + $0x8] sm:$0xf]
  %v18 = vld [vmem:[%s0 + $0xc] sm:$0xf]
  %v19 = vld [vmem:[%s0 + $0x10] sm:$0xf]
  %v20 = vld [vmem:[%s0 + $0x14] sm:$0xf]
  %v21 = vld [vmem:[%s0 + $0x18] sm:$0xf]
  %v22 = vld [vmem:[%s0 + $0x1c] sm:$0xf]
  %v23 = vld [vmem:[%s0 + $0x20] sm:$0xf]
  %v24 = vld [vmem:[%s0 + $0x24] sm:$0xf]
  %v25 = vld [vmem:[%s0 + $0x28] sm:$0xf]
  %v26 = vld [vmem:[%s0 + $0x2c] sm:$0xf]
  %v27 = vld [vmem:[%s0 + $0x30] sm:$0xf]
  %v28 = vld [vmem:[%s0 + $0x34] sm:$0xf]
  %v29 = vld [vmem:[%s0 + $0x38] sm:$0xf]
  %v30 = vld [vmem:[%s0 + $0x3c] sm:$0xf]
  %v31 = vld [vmem:[%s1] sm:$0xf]
  %v32 = vld [vmem:[%s1 + $0x4] sm:$0xf]
  %v33 = vld [vmem:[%s1 + $0x8] sm:$0xf]
  %v34 = vld [vmem:[%s1 + $0xc] sm:$0xf]
  %v35 = vld [vmem:[%s1 + $0x10] sm:$0xf]
  %v36 = vld [vmem:[%s1 + $0x14] sm:$0xf]
  %v37 = vld [vmem:[%s1 + $0x18] sm:$0xf]
  %v38 = vld [vmem:[%s1 + $0x1c] sm:$0xf]
  %v39 = vld [vmem:[%s1 + $0x20] sm:$0xf]
  %v40 = vld [vmem:[%s1 + $0x24] sm:$0xf]
  %v41 = vld [vmem:[%s1 + $0x28] sm:$0xf]
  %v42 = vld [vmem:[%s1 + $0x2c] sm:$0xf]
  %v43 = vld [vmem:[%s1 + $0x30] sm:$0xf]
  %v44 = vld [vmem:[%s1 + $0x34] sm:$0xf]
  %v45 = vld [vmem:[%s1 + $0x38] sm:$0xf]
  %v46 = vld [vmem:[%s1 + $0x3c] sm:$0xf]
  %v47 = vld [vmem:[%s2] sm:$0x1]
  %v49 = vlaneseq
  %v50 = vshrl.u32 %v49, 7
  %v51 = vsub.s32 0, %v50
  %v52 = vrot.slane %v47, %v51
  %v70 = vunpack.c.l.b16 %v15
  %v71 = vunpack.c.l.b16 %v16
  %v72 = vunpack.c.l.b16 %v17
  %v73 = vunpack.c.l.b16 %v18
  %v74 = vunpack.c.l.b16 %v19
  %v75 = vunpack.c.l.b16 %v20
  %v76 = vunpack.c.l.b16 %v21
  %v77 = vunpack.c.l.b16 %v22
  %v78 = vunpack.c.l.b16 %v23
  %v79 = vunpack.c.l.b16 %v24
  %v80 = vunpack.c.l.b16 %v25
  %v81 = vunpack.c.l.b16 %v26
  %v82 = vunpack.c.l.b16 %v27
  %v83 = vunpack.c.l.b16 %v28
  %v84 = vunpack.c.l.b16 %v29
  %v85 = vunpack.c.l.b16 %v30
  %v86 = vpack.c.b16 %v71, %v70
  %v87 = vpack.c.b16 %v73, %v72
  %v88 = vpack.c.b16 %v75, %v74
  %v89 = vpack.c.b16 %v77, %v76
  %v90 = vpack.c.b16 %v79, %v78
  %v91 = vpack.c.b16 %v81, %v80
  %v92 = vpack.c.b16 %v83, %v82
  %v93 = vpack.c.b16 %v85, %v84
  %v118 = vunpack.c.l.b16 %v31
  %v119 = vunpack.c.l.b16 %v32
  %v120 = vunpack.c.l.b16 %v33
  %v121 = vunpack.c.l.b16 %v34
  %v122 = vunpack.c.l.b16 %v35
  %v123 = vunpack.c.l.b16 %v36
  %v124 = vunpack.c.l.b16 %v37
  %v125 = vunpack.c.l.b16 %v38
  %v126 = vunpack.c.l.b16 %v39
  %v127 = vunpack.c.l.b16 %v40
  %v128 = vunpack.c.l.b16 %v41
  %v129 = vunpack.c.l.b16 %v42
  %v130 = vunpack.c.l.b16 %v43
  %v131 = vunpack.c.l.b16 %v44
  %v132 = vunpack.c.l.b16 %v45
  %v133 = vunpack.c.l.b16 %v46
  %v134 = vpack.c.b16 %v119, %v118
  %v135 = vpack.c.b16 %v121, %v120
  %v136 = vpack.c.b16 %v123, %v122
  %v137 = vpack.c.b16 %v125, %v124
  %v138 = vpack.c.b16 %v127, %v126
  %v139 = vpack.c.b16 %v129, %v128
  %v140 = vpack.c.b16 %v131, %v130
  %v141 = vpack.c.b16 %v133, %v132
  %150 = vmatprep.subr.bf16.mxu0 0
  %151 = vmatpush1.bf16.msra.mxu0 %v134
  %152 = vmatprep.subr.bf16.mxu0 0
  %153 = vmatpush1.bf16.msra.mxu0 %v135
  %154 = vmatprep.subr.bf16.mxu0 0
  %155 = vmatpush1.bf16.msra.mxu0 %v136
  %156 = vmatprep.subr.bf16.mxu0 0
  %157 = vmatpush1.bf16.msra.mxu0 %v137
  %158 = vmatprep.subr.bf16.mxu0 0
  %159 = vmatpush1.bf16.msra.mxu0 %v138
  %160 = vmatprep.subr.bf16.mxu0 0
  %161 = vmatpush1.bf16.msra.mxu0 %v139
  %162 = vmatprep.subr.bf16.mxu0 0
  %163 = vmatpush1.bf16.msra.mxu0 %v140
  %164 = vmatprep.subr.bf16.mxu0 0
  %165 = vmatpush1.bf16.msra.mxu0 %v141
  %166 = vmatprep.subr.bf16.mxu0 0
  %167 = vmatpush1.bf16.msra.mxu0 0
  %168 = vmatprep.subr.bf16.mxu0 0
  %169 = vmatpush1.bf16.msra.mxu0 0
  %170 = vmatprep.subr.bf16.mxu0 0
  %171 = vmatpush1.bf16.msra.mxu0 0
  %172 = vmatprep.subr.bf16.mxu0 0
  %173 = vmatpush1.bf16.msra.mxu0 0
  %174 = vmatprep.subr.bf16.mxu0 0
  %175 = vmatpush1.bf16.msra.mxu0 0
  %176 = vmatprep.subr.bf16.mxu0 0
  %177 = vmatpush1.bf16.msra.mxu0 0
  %178 = vmatprep.subr.bf16.mxu0 0
  %179 = vmatpush1.bf16.msra.mxu0 0
  %180 = vmatprep.subr.bf16.mxu0 0
  %181 = vmatpush1.bf16.msra.mxu0 0
  %182 = vmatprep.mubr.bf16.mxu0 0
  %183 = vmatmul.mubr.bf16.gmra.mrb[0].mxu0 %v86
  %v184 = vpop.f32.mrb[0].mxu0
  %v185 = vadd.f32 %v52, %v184
  %v186 = vpop.f32.mrb[0].mxu0
  %v187 = vpop.f32.mrb[0].mxu0
  %v188 = vadd.f32 %v52, %v187
  %v189 = vpop.f32.mrb[0].mxu0
  %190 = vmatprep.mubr.bf16.mxu0 0
  %191 = vmatmul.mubr.bf16.gmra.mrb[0].mxu0 %v87
  %v192 = vpop.f32.mrb[0].mxu0
  %v193 = vadd.f32 %v52, %v192
  %v194 = vpop.f32.mrb[0].mxu0
  %v195 = vpop.f32.mrb[0].mxu0
  %v196 = vadd.f32 %v52, %v195
  %v197 = vpop.f32.mrb[0].mxu0
  %198 = vmatprep.mubr.bf16.mxu0 0
  %199 = vmatmul.mubr.bf16.gmra.mrb[0].mxu0 %v88
  %v200 = vpop.f32.mrb[0].mxu0
  %v201 = vadd.f32 %v52, %v200
  %v202 = vpop.f32.mrb[0].mxu0
  %v203 = vpop.f32.mrb[0].mxu0
  %v204 = vadd.f32 %v52, %v203
  %v205 = vpop.f32.mrb[0].mxu0
  %206 = vmatprep.mubr.bf16.mxu0 0
  %207 = vmatmul.mubr.bf16.gmra.mrb[0].mxu0 %v89
  %v208 = vpop.f32.mrb[0].mxu0
  %v209 = vadd.f32 %v52, %v208
  %v210 = vpop.f32.mrb[0].mxu0
  %v211 = vpop.f32.mrb[0].mxu0
  %v212 = vadd.f32 %v52, %v211
  %v213 = vpop.f32.mrb[0].mxu0
  %214 = vmatprep.mubr.bf16.mxu0 0
  %215 = vmatmul.mubr.bf16.gmra.mrb[0].mxu0 %v90
  %v216 = vpop.f32.mrb[0].mxu0
  %v217 = vadd.f32 %v52, %v216
  %v218 = vpop.f32.mrb[0].mxu0
  %v219 = vpop.f32.mrb[0].mxu0
  %v220 = vadd.f32 %v52, %v219
  %v221 = vpop.f32.mrb[0].mxu0
  %222 = vmatprep.mubr.bf16.mxu0 0
  %223 = vmatmul.mubr.bf16.gmra.mrb[0].mxu0 %v91
  %v224 = vpop.f32.mrb[0].mxu0
  %v225 = vadd.f32 %v52, %v224
  %v226 = vpop.f32.mrb[0].mxu0
  %v227 = vpop.f32.mrb[0].mxu0
  %v228 = vadd.f32 %v52, %v227
  %v229 = vpop.f32.mrb[0].mxu0
  %230 = vmatprep.mubr.bf16.mxu0 0
  %231 = vmatmul.mubr.bf16.gmra.mrb[0].mxu0 %v92
  %v232 = vpop.f32.mrb[0].mxu0
  %v233 = vadd.f32 %v52, %v232
  %v234 = vpop.f32.mrb[0].mxu0
  %v235 = vpop.f32.mrb[0].mxu0
  %v236 = vadd.f32 %v52, %v235
  %v237 = vpop.f32.mrb[0].mxu0
  %238 = vmatprep.mubr.bf16.mxu0 0
  %239 = vmatmul.mubr.bf16.gmra.mrb[0].mxu0 %v93
  %v240 = vpop.f32.mrb[0].mxu0
  %v241 = vadd.f32 %v52, %v240
  %v242 = vpop.f32.mrb[0].mxu0
  %v243 = vpop.f32.mrb[0].mxu0
  %v244 = vadd.f32 %v52, %v243
  %v245 = vpop.f32.mrb[0].mxu0
  %246 = vdwg.mxu0
  %v247 = vlaneseq
  %v248 = vand.u32 %v247, 127
  %vm249 = vcmp.lt.s32.totalorder %v248, 8
  %v250 = vsel %vm249, %v185, -1e+30
  %v251 = vsel %vm249, %v188, -1e+30
  %v252 = vsel %vm249, %v193, -1e+30
  %v253 = vsel %vm249, %v196, -1e+30
  %v254 = vsel %vm249, %v201, -1e+30
  %v255 = vsel %vm249, %v204, -1e+30
  %v256 = vsel %vm249, %v209, -1e+30
  %v257 = vsel %vm249, %v212, -1e+30
  %v258 = vsel %vm249, %v217, -1e+30
  %v259 = vsel %vm249, %v220, -1e+30
  %v260 = vsel %vm249, %v225, -1e+30
  %v261 = vsel %vm249, %v228, -1e+30
  %v262 = vsel %vm249, %v233, -1e+30
  %v263 = vsel %vm249, %v236, -1e+30
  %v264 = vsel %vm249, %v241, -1e+30
  %v265 = vsel %vm249, %v244, -1e+30
  %266 = vmax.xlane.f32.xlu0 %v250
  %v267 = vpop.xlane.xlu0 %266
  %268 = vmax.xlane.f32.xlu0 %v251
  %v269 = vpop.xlane.xlu0 %268
  %270 = vmax.xlane.f32.xlu0 %v252
  %v271 = vpop.xlane.xlu0 %270
  %272 = vmax.xlane.f32.xlu0 %v253
  %v273 = vpop.xlane.xlu0 %272
  %274 = vmax.xlane.f32.xlu0 %v254
  %v275 = vpop.xlane.xlu0 %274
  %276 = vmax.xlane.f32.xlu0 %v255
  %v277 = vpop.xlane.xlu0 %276
  %278 = vmax.xlane.f32.xlu0 %v256
  %v279 = vpop.xlane.xlu0 %278
  %280 = vmax.xlane.f32.xlu0 %v257
  %v281 = vpop.xlane.xlu0 %280
  %282 = vmax.xlane.f32.xlu0 %v258
  %v283 = vpop.xlane.xlu0 %282
  %284 = vmax.xlane.f32.xlu0 %v259
  %v285 = vpop.xlane.xlu0 %284
  %286 = vmax.xlane.f32.xlu0 %v260
  %v287 = vpop.xlane.xlu0 %286
  %288 = vmax.xlane.f32.xlu0 %v261
  %v289 = vpop.xlane.xlu0 %288
  %290 = vmax.xlane.f32.xlu0 %v262
  %v291 = vpop.xlane.xlu0 %290
  %292 = vmax.xlane.f32.xlu0 %v263
  %v293 = vpop.xlane.xlu0 %292
  %294 = vmax.xlane.f32.xlu0 %v264
  %v295 = vpop.xlane.xlu0 %294
  %296 = vmax.xlane.f32.xlu0 %v265
  %v297 = vpop.xlane.xlu0 %296
  %v298 = vsub.f32 %v185, %v267
  %v299 = vsub.f32 %v188, %v269
  %v300 = vsub.f32 %v193, %v271
  %v301 = vsub.f32 %v196, %v273
  %v302 = vsub.f32 %v201, %v275
  %v303 = vsub.f32 %v204, %v277
  %v304 = vsub.f32 %v209, %v279
  %v305 = vsub.f32 %v212, %v281
  %v306 = vsub.f32 %v217, %v283
  %v307 = vsub.f32 %v220, %v285
  %v308 = vsub.f32 %v225, %v287
  %v309 = vsub.f32 %v228, %v289
  %v310 = vsub.f32 %v233, %v291
  %v311 = vsub.f32 %v236, %v293
  %v312 = vsub.f32 %v241, %v295
  %v313 = vsub.f32 %v244, %v297
  %v314 = vmul.f32 %v298, 1.442695
  %v315 = vpow.pop %v314
  %v316 = vmul.f32 %v299, 1.442695
  %v317 = vpow.pop %v316
  %v318 = vmul.f32 %v300, 1.442695
  %v319 = vpow.pop %v318
  %v320 = vmul.f32 %v301, 1.442695
  %v321 = vpow.pop %v320
  %v322 = vmul.f32 %v302, 1.442695
  %v323 = vpow.pop %v322
  %v324 = vmul.f32 %v303, 1.442695
  %v325 = vpow.pop %v324
  %v326 = vmul.f32 %v304, 1.442695
  %v327 = vpow.pop %v326
  %v328 = vmul.f32 %v305, 1.442695
  %v329 = vpow.pop %v328
  %v330 = vmul.f32 %v306, 1.442695
  %v331 = vpow.pop %v330
  %v332 = vmul.f32 %v307, 1.442695
  %v333 = vpow.pop %v332
  %v334 = vmul.f32 %v308, 1.442695
  %v335 = vpow.pop %v334
  %v336 = vmul.f32 %v309, 1.442695
  %v337 = vpow.pop %v336
  %v338 = vmul.f32 %v310, 1.442695
  %v339 = vpow.pop %v338
  %v340 = vmul.f32 %v311, 1.442695
  %v341 = vpow.pop %v340
  %v342 = vmul.f32 %v312, 1.442695
  %v343 = vpow.pop %v342
  %v344 = vmul.f32 %v313, 1.442695
  %v345 = vpow.pop %v344
  %v346 = vsel %vm249, %v315, 0.0
  %v347 = vsel %vm249, %v317, 0.0
  %v348 = vsel %vm249, %v319, 0.0
  %v349 = vsel %vm249, %v321, 0.0
  %v350 = vsel %vm249, %v323, 0.0
  %v351 = vsel %vm249, %v325, 0.0
  %v352 = vsel %vm249, %v327, 0.0
  %v353 = vsel %vm249, %v329, 0.0
  %v354 = vsel %vm249, %v331, 0.0
  %v355 = vsel %vm249, %v333, 0.0
  %v356 = vsel %vm249, %v335, 0.0
  %v357 = vsel %vm249, %v337, 0.0
  %v358 = vsel %vm249, %v339, 0.0
  %v359 = vsel %vm249, %v341, 0.0
  %v360 = vsel %vm249, %v343, 0.0
  %v361 = vsel %vm249, %v345, 0.0
  %362 = vadd.xlane.f32.xlu0 %v346
  %v363 = vpop.xlane.xlu0 %362
  %364 = vadd.xlane.f32.xlu0 %v347
  %v365 = vpop.xlane.xlu0 %364
  %366 = vadd.xlane.f32.xlu0 %v348
  %v367 = vpop.xlane.xlu0 %366
  %368 = vadd.xlane.f32.xlu0 %v349
  %v369 = vpop.xlane.xlu0 %368
  %370 = vadd.xlane.f32.xlu0 %v350
  %v371 = vpop.xlane.xlu0 %370
  %372 = vadd.xlane.f32.xlu0 %v351
  %v373 = vpop.xlane.xlu0 %372
  %374 = vadd.xlane.f32.xlu0 %v352
  %v375 = vpop.xlane.xlu0 %374
  %376 = vadd.xlane.f32.xlu0 %v353
  %v377 = vpop.xlane.xlu0 %376
  %378 = vadd.xlane.f32.xlu0 %v354
  %v379 = vpop.xlane.xlu0 %378
  %380 = vadd.xlane.f32.xlu0 %v355
  %v381 = vpop.xlane.xlu0 %380
  %382 = vadd.xlane.f32.xlu0 %v356
  %v383 = vpop.xlane.xlu0 %382
  %384 = vadd.xlane.f32.xlu0 %v357
  %v385 = vpop.xlane.xlu0 %384
  %386 = vadd.xlane.f32.xlu0 %v358
  %v387 = vpop.xlane.xlu0 %386
  %388 = vadd.xlane.f32.xlu0 %v359
  %v389 = vpop.xlane.xlu0 %388
  %390 = vadd.xlane.f32.xlu0 %v360
  %v391 = vpop.xlane.xlu0 %390
  %392 = vadd.xlane.f32.xlu0 %v361
  %v393 = vpop.xlane.xlu0 %392
  %v394 = vlog2.pop %v363
  %v395 = vmul.f32 %v394, 0.6931472
  %v396 = vlog2.pop %v365
  %v397 = vmul.f32 %v396, 0.6931472
  %v398 = vlog2.pop %v367
  %v399 = vmul.f32 %v398, 0.6931472
  %v400 = vlog2.pop %v369
  %v401 = vmul.f32 %v400, 0.6931472
  %v402 = vlog2.pop %v371
  %v403 = vmul.f32 %v402, 0.6931472
  %v404 = vlog2.pop %v373
  %v405 = vmul.f32 %v404, 0.6931472
  %v406 = vlog2.pop %v375
  %v407 = vmul.f32 %v406, 0.6931472
  %v408 = vlog2.pop %v377
  %v409 = vmul.f32 %v408, 0.6931472
  %v410 = vlog2.pop %v379
  %v411 = vmul.f32 %v410, 0.6931472
  %v412 = vlog2.pop %v381
  %v413 = vmul.f32 %v412, 0.6931472
  %v414 = vlog2.pop %v383
  %v415 = vmul.f32 %v414, 0.6931472
  %v416 = vlog2.pop %v385
  %v417 = vmul.f32 %v416, 0.6931472
  %v418 = vlog2.pop %v387
  %v419 = vmul.f32 %v418, 0.6931472
  %v420 = vlog2.pop %v389
  %v421 = vmul.f32 %v420, 0.6931472
  %v422 = vlog2.pop %v391
  %v423 = vmul.f32 %v422, 0.6931472
  %v424 = vlog2.pop %v393
  %v425 = vmul.f32 %v424, 0.6931472
  %v426 = vsub.f32 %v298, %v395
  %v427 = vsub.f32 %v299, %v397
  %v428 = vsub.f32 %v300, %v399
  %v429 = vsub.f32 %v301, %v401
  %v430 = vsub.f32 %v302, %v403
  %v431 = vsub.f32 %v303, %v405
  %v432 = vsub.f32 %v304, %v407
  %v433 = vsub.f32 %v305, %v409
  %v434 = vsub.f32 %v306, %v411
  %v435 = vsub.f32 %v307, %v413
  %v436 = vsub.f32 %v308, %v415
  %v437 = vsub.f32 %v309, %v417
  %v438 = vsub.f32 %v310, %v419
  %v439 = vsub.f32 %v311, %v421
  %v440 = vsub.f32 %v312, %v423
  %v441 = vsub.f32 %v313, %v425
  %442 = vst [vmem:[%s3] sm:$0xff] %v426
  %443 = vst [vmem:[%s3 + $0x8] sm:$0xff] %v427
  %444 = vst [vmem:[%s3 + $0x10] sm:$0xff] %v428
  %445 = vst [vmem:[%s3 + $0x18] sm:$0xff] %v429
  %446 = vst [vmem:[%s3 + $0x20] sm:$0xff] %v430
  %447 = vst [vmem:[%s3 + $0x28] sm:$0xff] %v431
  %448 = vst [vmem:[%s3 + $0x30] sm:$0xff] %v432
  %449 = vst [vmem:[%s3 + $0x38] sm:$0xff] %v433
  %450 = vst [vmem:[%s3 + $0x40] sm:$0xff] %v434
  %451 = vst [vmem:[%s3 + $0x48] sm:$0xff] %v435
  %452 = vst [vmem:[%s3 + $0x50] sm:$0xff] %v436
  %453 = vst [vmem:[%s3 + $0x58] sm:$0xff] %v437
  %454 = vst [vmem:[%s3 + $0x60] sm:$0xff] %v438
  %455 = vst [vmem:[%s3 + $0x68] sm:$0xff] %v439
  %456 = vst [vmem:[%s3 + $0x70] sm:$0xff] %v440
  %457 = vst [vmem:[%s3 + $0x78] sm:$0xff] %v441
  // Predicated region
  $region14: #{gcn_net_forward.3} parent=0 // pred_check
    _
  $region15: #{gcn_net_forward.3} parent=0 // pred_check_branch
    %459 = sbr.rel (0) target = $region17
  $region16: #{gcn_net_forward.3} parent=0 // pred_region
    _
  $region17: #{gcn_net_forward.3} parent=0 // pred_fallthru
    _
  // Predicated region
  $region18: #{gcn_net_forward.3} parent=0 // pred_check
    _
  $region19: #{gcn_net_forward.3} parent=0 // pred_check_branch
    %461 = sbr.rel (0) target = $region21
  $region20: #{gcn_net_forward.3} parent=0 // pred_region
    _
  $region21: #{gcn_net_forward.3} parent=0 // pred_fallthru
    _

// kernel: gcn_net_forward.2
$region0: #{gcn_net_forward.2}
  #allocation0 [shape = 'u32[]', space=smem, size = 0x4, offset = 0x4, fixed_abs, tag = 'smem constant byte address 0x4 - core index']
  #allocation1 [shape = 'u32[144,128]{1,0:T(1,128)}', space=vmem, size = 0x12000, scoped, tag = 'internal scratch']
  %s0 = inlined_call_operand.vmem [shape: bf16[128,128], index: 0, kind: input, shape index: {}]
  %s1 = inlined_call_operand.vmem [shape: bf16[128,128], index: 1, kind: input, shape index: {}]
  %s2 = inlined_call_operand.vmem [shape: bf16[128,128], index: 2, kind: input, shape index: {}]
  %s3 = inlined_call_operand.vmem [shape: f32[1,128], index: 3, kind: input, shape index: {}]
  %s4 = inlined_call_operand.vmem [shape: bf16[128,128], index: 4, kind: input, shape index: {}]
  %s5 = inlined_call_operand.vmem [shape: bf16[128,128], index: 5, kind: output, shape index: {}]
  %s6 = sld [smem:[#allocation0]]
  $region30: #{gcn_net_forward.2} parent=0
    _
  %s8 = ssub.s32 1, %s6
  %s9 = scalar_select 0, %s8, %s6
  // Predicated region
  $region2: #{gcn_net_forward.2} parent=0 // pred_check
    _
  $region3: #{gcn_net_forward.2} parent=0 // pred_check_branch
    %11 = sbr.rel (0) target = $region5
  $region4: #{gcn_net_forward.2} parent=0 // pred_region
    _
  $region5: #{gcn_net_forward.2} parent=0 // pred_fallthru
    _
  // Predicated region
  $region6: #{gcn_net_forward.2} parent=0 // pred_check
    _
  $region7: #{gcn_net_forward.2} parent=0 // pred_check_branch
    %13 = sbr.rel (0) target = $region9
  $region8: #{gcn_net_forward.2} parent=0 // pred_region
    _
  $region9: #{gcn_net_forward.2} parent=0 // pred_fallthru
    _
  // Predicated region
  $region10: #{gcn_net_forward.2} parent=0 // pred_check
    _
  $region11: #{gcn_net_forward.2} parent=0 // pred_check_branch
    %15 = sbr.rel (0) target = $region13
  $region12: #{gcn_net_forward.2} parent=0 // pred_region
    _
  $region13: #{gcn_net_forward.2} parent=0 // pred_fallthru
    _
  // Predicated region
  $region14: #{gcn_net_forward.2} parent=0 // pred_check
    _
  $region15: #{gcn_net_forward.2} parent=0 // pred_check_branch
    %17 = sbr.rel (0) target = $region17
  $region16: #{gcn_net_forward.2} parent=0 // pred_region
    _
  $region17: #{gcn_net_forward.2} parent=0 // pred_fallthru
    _
  // Predicated region
  $region18: #{gcn_net_forward.2} parent=0 // pred_check
    _
  $region19: #{gcn_net_forward.2} parent=0 // pred_check_branch
    %19 = sbr.rel (0) target = $region21
  $region20: #{gcn_net_forward.2} parent=0 // pred_region
    _
  $region21: #{gcn_net_forward.2} parent=0 // pred_fallthru
    _
  %v21 = vld [vmem:[%s0] sm:$0xf]
  %v22 = vld [vmem:[%s0 + $0x4] sm:$0xf]
  %v23 = vld [vmem:[%s0 + $0x8] sm:$0xf]
  %v24 = vld [vmem:[%s0 + $0xc] sm:$0xf]
  %v25 = vld [vmem:[%s0 + $0x10] sm:$0xf]
  %v26 = vld [vmem:[%s0 + $0x14] sm:$0xf]
  %v27 = vld [vmem:[%s0 + $0x18] sm:$0xf]
  %v28 = vld [vmem:[%s0 + $0x1c] sm:$0xf]
  %v29 = vld [vmem:[%s0 + $0x20] sm:$0xf]
  %v30 = vld [vmem:[%s0 + $0x24] sm:$0xf]
  %v31 = vld [vmem:[%s0 + $0x28] sm:$0xf]
  %v32 = vld [vmem:[%s0 + $0x2c] sm:$0xf]
  %v33 = vld [vmem:[%s0 + $0x30] sm:$0xf]
  %v34 = vld [vmem:[%s0 + $0x34] sm:$0xf]
  %v35 = vld [vmem:[%s0 + $0x38] sm:$0xf]
  %v36 = vld [vmem:[%s0 + $0x3c] sm:$0xf]
  %v37 = vld [vmem:[%s1] sm:$0xf]
  %v38 = vld [vmem:[%s1 + $0x4] sm:$0xf]
  %v39 = vld [vmem:[%s1 + $0x8] sm:$0xf]
  %v40 = vld [vmem:[%s1 + $0xc] sm:$0xf]
  %v41 = vld [vmem:[%s1 + $0x10] sm:$0xf]
  %v42 = vld [vmem:[%s1 + $0x14] sm:$0xf]
  %v43 = vld [vmem:[%s1 + $0x18] sm:$0xf]
  %v44 = vld [vmem:[%s1 + $0x1c] sm:$0xf]
  %v45 = vld [vmem:[%s1 + $0x20] sm:$0xf]
  %v46 = vld [vmem:[%s1 + $0x24] sm:$0xf]
  %v47 = vld [vmem:[%s1 + $0x28] sm:$0xf]
  %v48 = vld [vmem:[%s1 + $0x2c] sm:$0xf]
  %v49 = vld [vmem:[%s1 + $0x30] sm:$0xf]
  %v50 = vld [vmem:[%s1 + $0x34] sm:$0xf]
  %v51 = vld [vmem:[%s1 + $0x38] sm:$0xf]
  %v52 = vld [vmem:[%s1 + $0x3c] sm:$0xf]
  %v69 = vunpack.c.l.b16 %v21
  %v70 = vunpack.c.l.b16 %v22
  %v71 = vunpack.c.l.b16 %v23
  %v72 = vunpack.c.l.b16 %v24
  %v73 = vunpack.c.l.b16 %v25
  %v74 = vunpack.c.l.b16 %v26
  %v75 = vunpack.c.l.b16 %v27
  %v76 = vunpack.c.l.b16 %v28
  %v77 = vunpack.c.l.b16 %v29
  %v78 = vunpack.c.l.b16 %v30
  %v79 = vunpack.c.l.b16 %v31
  %v80 = vunpack.c.l.b16 %v32
  %v81 = vunpack.c.l.b16 %v33
  %v82 = vunpack.c.l.b16 %v34
  %v83 = vunpack.c.l.b16 %v35
  %v84 = vunpack.c.l.b16 %v36
  %v85 = vpack.c.b16 %v70, %v69
  %v86 = vpack.c.b16 %v72, %v71
  %v87 = vpack.c.b16 %v74, %v73
  %v88 = vpack.c.b16 %v76, %v75
  %v89 = vpack.c.b16 %v78, %v77
  %v90 = vpack.c.b16 %v80, %v79
  %v91 = vpack.c.b16 %v82, %v81
  %v92 = vpack.c.b16 %v84, %v83
  %v117 = vunpack.c.l.b16 %v37
  %v118 = vunpack.c.l.b16 %v38
  %v119 = vunpack.c.l.b16 %v39
  %v120 = vunpack.c.l.b16 %v40
  %v121 = vunpack.c.l.b16 %v41
  %v122 = vunpack.c.l.b16 %v42
  %v123 = vunpack.c.l.b16 %v43
  %v124 = vunpack.c.l.b16 %v44
  %v125 = vunpack.c.l.b16 %v45
  %v126 = vunpack.c.l.b16 %v46
  %v127 = vunpack.c.l.b16 %v47
  %v128 = vunpack.c.l.b16 %v48
  %v129 = vunpack.c.l.b16 %v49
  %v130 = vunpack.c.l.b16 %v50
  %v131 = vunpack.c.l.b16 %v51
  %v132 = vunpack.c.l.b16 %v52
  %v133 = vpack.c.b16 %v118, %v117
  %v134 = vpack.c.b16 %v120, %v119
  %v135 = vpack.c.b16 %v122, %v121
  %v136 = vpack.c.b16 %v124, %v123
  %v137 = vpack.c.b16 %v126, %v125
  %v138 = vpack.c.b16 %v128, %v127
  %v139 = vpack.c.b16 %v130, %v129
  %v140 = vpack.c.b16 %v132, %v131
  %149 = vmatprep.subr.bf16.mxu0 0
  %150 = vmatpush1.bf16.msra.mxu0 %v133
  %151 = vmatprep.subr.bf16.mxu0 0
  %152 = vmatpush1.bf16.msra.mxu0 %v134
  %153 = vmatprep.subr.bf16.mxu0 0
  %154 = vmatpush1.bf16.msra.mxu0 %v135
  %155 = vmatprep.subr.bf16.mxu0 0
  %156 = vmatpush1.bf16.msra.mxu0 %v136
  %157 = vmatprep.subr.bf16.mxu0 0
  %158 = vmatpush1.bf16.msra.mxu0 %v137
  %159 = vmatprep.subr.bf16.mxu0 0
  %160 = vmatpush1.bf16.msra.mxu0 %v138
  %161 = vmatprep.subr.bf16.mxu0 0
  %162 = vmatpush1.bf16.msra.mxu0 %v139
  %163 = vmatprep.subr.bf16.mxu0 0
  %164 = vmatpush1.bf16.msra.mxu0 %v140
  %165 = vmatprep.subr.bf16.mxu0 0
  %166 = vmatpush1.bf16.msra.mxu0 0
  %167 = vmatprep.subr.bf16.mxu0 0
  %168 = vmatpush1.bf16.msra.mxu0 0
  %169 = vmatprep.subr.bf16.mxu0 0
  %170 = vmatpush1.bf16.msra.mxu0 0
  %171 = vmatprep.subr.bf16.mxu0 0
  %172 = vmatpush1.bf16.msra.mxu0 0
  %173 = vmatprep.subr.bf16.mxu0 0
  %174 = vmatpush1.bf16.msra.mxu0 0
  %175 = vmatprep.subr.bf16.mxu0 0
  %176 = vmatpush1.bf16.msra.mxu0 0
  %177 = vmatprep.subr.bf16.mxu0 0
  %178 = vmatpush1.bf16.msra.mxu0 0
  %179 = vmatprep.subr.bf16.mxu0 0
  %180 = vmatpush1.bf16.msra.mxu0 0
  %181 = vmatprep.mubr.bf16.mxu0 0
  %182 = vmatmul.mubr.bf16.gmra.mrb[0].mxu0 %v85
  %v183 = vpop.f32.mrb[0].mxu0
  %v184 = vadd.f32 0.0, %v183
  %v185 = vpop.f32.mrb[0].mxu0
  %v186 = vpop.f32.mrb[0].mxu0
  %v187 = vadd.f32 0.0, %v186
  %v188 = vpop.f32.mrb[0].mxu0
  %189 = vmatprep.mubr.bf16.mxu0 0
  %190 = vmatmul.mubr.bf16.gmra.mrb[0].mxu0 %v86
  %v191 = vpop.f32.mrb[0].mxu0
  %v192 = vadd.f32 0.0, %v191
  %v193 = vpop.f32.mrb[0].mxu0
  %v194 = vpop.f32.mrb[0].mxu0
  %v195 = vadd.f32 0.0, %v194
  %v196 = vpop.f32.mrb[0].mxu0
  %197 = vmatprep.mubr.bf16.mxu0 0
  %198 = vmatmul.mubr.bf16.gmra.mrb[0].mxu0 %v87
  %v199 = vpop.f32.mrb[0].mxu0
  %v200 = vadd.f32 0.0, %v199
  %v201 = vpop.f32.mrb[0].mxu0
  %v202 = vpop.f32.mrb[0].mxu0
  %v203 = vadd.f32 0.0, %v202
  %v204 = vpop.f32.mrb[0].mxu0
  %205 = vmatprep.mubr.bf16.mxu0 0
  %206 = vmatmul.mubr.bf16.gmra.mrb[0].mxu0 %v88
  %v207 = vpop.f32.mrb[0].mxu0
  %v208 = vadd.f32 0.0, %v207
  %v209 = vpop.f32.mrb[0].mxu0
  %v210 = vpop.f32.mrb[0].mxu0
  %v211 = vadd.f32 0.0, %v210
  %v212 = vpop.f32.mrb[0].mxu0
  %213 = vmatprep.mubr.bf16.mxu0 0
  %214 = vmatmul.mubr.bf16.gmra.mrb[0].mxu0 %v89
  %v215 = vpop.f32.mrb[0].mxu0
  %v216 = vadd.f32 0.0, %v215
  %v217 = vpop.f32.mrb[0].mxu0
  %v218 = vpop.f32.mrb[0].mxu0
  %v219 = vadd.f32 0.0, %v218
  %v220 = vpop.f32.mrb[0].mxu0
  %221 = vmatprep.mubr.bf16.mxu0 0
  %222 = vmatmul.mubr.bf16.gmra.mrb[0].mxu0 %v90
  %v223 = vpop.f32.mrb[0].mxu0
  %v224 = vadd.f32 0.0, %v223
  %v225 = vpop.f32.mrb[0].mxu0
  %v226 = vpop.f32.mrb[0].mxu0
  %v227 = vadd.f32 0.0, %v226
  %v228 = vpop.f32.mrb[0].mxu0
  %229 = vmatprep.mubr.bf16.mxu0 0
  %230 = vmatmul.mubr.bf16.gmra.mrb[0].mxu0 %v91
  %v231 = vpop.f32.mrb[0].mxu0
  %v232 = vadd.f32 0.0, %v231
  %v233 = vpop.f32.mrb[0].mxu0
  %v234 = vpop.f32.mrb[0].mxu0
  %v235 = vadd.f32 0.0, %v234
  %v236 = vpop.f32.mrb[0].mxu0
  %237 = vmatprep.mubr.bf16.mxu0 0
  %238 = vmatmul.mubr.bf16.gmra.mrb[0].mxu0 %v92
  %v239 = vpop.f32.mrb[0].mxu0
  %v240 = vadd.f32 0.0, %v239
  %v241 = vpop.f32.mrb[0].mxu0
  %v242 = vpop.f32.mrb[0].mxu0
  %v243 = vadd.f32 0.0, %v242
  %v244 = vpop.f32.mrb[0].mxu0
  %245 = vdwg.mxu0
  %v246 = vpack.c.bf16 %v187, %v184
  %v247 = vpack.c.bf16 %v195, %v192
  %v248 = vpack.c.bf16 %v203, %v200
  %v249 = vpack.c.bf16 %v211, %v208
  %v250 = vpack.c.bf16 %v219, %v216
  %v251 = vpack.c.bf16 %v227, %v224
  %v252 = vpack.c.bf16 %v235, %v232
  %v253 = vpack.c.bf16 %v243, %v240
  %v254 = vld [vmem:[%s2] sm:$0xf]
  %v255 = vld [vmem:[%s2 + $0x4] sm:$0xf]
  %v256 = vld [vmem:[%s2 + $0x8] sm:$0xf]
  %v257 = vld [vmem:[%s2 + $0xc] sm:$0xf]
  %v258 = vld [vmem:[%s2 + $0x10] sm:$0xf]
  %v259 = vld [vmem:[%s2 + $0x14] sm:$0xf]
  %v260 = vld [vmem:[%s2 + $0x18] sm:$0xf]
  %v261 = vld [vmem:[%s2 + $0x1c] sm:$0xf]
  %v262 = vld [vmem:[%s2 + $0x20] sm:$0xf]
  %v263 = vld [vmem:[%s2 + $0x24] sm:$0xf]
  %v264 = vld [vmem:[%s2 + $0x28] sm:$0xf]
  %v265 = vld [vmem:[%s2 + $0x2c] sm:$0xf]
  %v266 = vld [vmem:[%s2 + $0x30] sm:$0xf]
  %v267 = vld [vmem:[%s2 + $0x34] sm:$0xf]
  %v268 = vld [vmem:[%s2 + $0x38] sm:$0xf]
  %v269 = vld [vmem:[%s2 + $0x3c] sm:$0xf]
  %v270 = vld [vmem:[%s3] sm:$0x1]
  %v272 = vlaneseq
  %v273 = vshrl.u32 %v272, 7
  %v274 = vsub.s32 0, %v273
  %v275 = vrot.slane %v270, %v274
  %v293 = vunpack.c.l.b16 %v254
  %v294 = vunpack.c.l.b16 %v255
  %v295 = vunpack.c.l.b16 %v256
  %v296 = vunpack.c.l.b16 %v257
  %v297 = vunpack.c.l.b16 %v258
  %v298 = vunpack.c.l.b16 %v259
  %v299 = vunpack.c.l.b16 %v260
  %v300 = vunpack.c.l.b16 %v261
  %v301 = vunpack.c.l.b16 %v262
  %v302 = vunpack.c.l.b16 %v263
  %v303 = vunpack.c.l.b16 %v264
  %v304 = vunpack.c.l.b16 %v265
  %v305 = vunpack.c.l.b16 %v266
  %v306 = vunpack.c.l.b16 %v267
  %v307 = vunpack.c.l.b16 %v268
  %v308 = vunpack.c.l.b16 %v269
  %v309 = vpack.c.b16 %v294, %v293
  %v310 = vpack.c.b16 %v296, %v295
  %v311 = vpack.c.b16 %v298, %v297
  %v312 = vpack.c.b16 %v300, %v299
  %v313 = vpack.c.b16 %v302, %v301
  %v314 = vpack.c.b16 %v304, %v303
  %v315 = vpack.c.b16 %v306, %v305
  %v316 = vpack.c.b16 %v308, %v307
  %325 = vmatprep.subr.bf16.mxu0 0
  %326 = vmatpush1.bf16.msra.mxu0 %v309
  %327 = vmatprep.subr.bf16.mxu0 0
  %328 = vmatpush1.bf16.msra.mxu0 %v310
  %329 = vmatprep.subr.bf16.mxu0 0
  %330 = vmatpush1.bf16.msra.mxu0 %v311
  %331 = vmatprep.subr.bf16.mxu0 0
  %332 = vmatpush1.bf16.msra.mxu0 %v312
  %333 = vmatprep.subr.bf16.mxu0 0
  %334 = vmatpush1.bf16.msra.mxu0 %v313
  %335 = vmatprep.subr.bf16.mxu0 0
  %336 = vmatpush1.bf16.msra.mxu0 %v314
  %337 = vmatprep.subr.bf16.mxu0 0
  %338 = vmatpush1.bf16.msra.mxu0 %v315
  %339 = vmatprep.subr.bf16.mxu0 0
  %340 = vmatpush1.bf16.msra.mxu0 %v316
  %341 = vmatprep.subr.bf16.mxu0 0
  %342 = vmatpush1.bf16.msra.mxu0 0
  %343 = vmatprep.subr.bf16.mxu0 0
  %344 = vmatpush1.bf16.msra.mxu0 0
  %345 = vmatprep.subr.bf16.mxu0 0
  %346 = vmatpush1.bf16.msra.mxu0 0
  %347 = vmatprep.subr.bf16.mxu0 0
  %348 = vmatpush1.bf16.msra.mxu0 0
  %349 = vmatprep.subr.bf16.mxu0 0
  %350 = vmatpush1.bf16.msra.mxu0 0
  %351 = vmatprep.subr.bf16.mxu0 0
  %352 = vmatpush1.bf16.msra.mxu0 0
  %353 = vmatprep.subr.bf16.mxu0 0
  %354 = vmatpush1.bf16.msra.mxu0 0
  %355 = vmatprep.subr.bf16.mxu0 0
  %356 = vmatpush1.bf16.msra.mxu0 0
  %357 = vmatprep.mubr.bf16.mxu0 0
  %358 = vmatmul.mubr.bf16.gmra.mrb[0].mxu0 %v246
  %v359 = vpop.f32.mrb[0].mxu0
  %v360 = vadd.f32 %v275, %v359
  %v361 = vpop.f32.mrb[0].mxu0
  %v362 = vpop.f32.mrb[0].mxu0
  %v363 = vadd.f32 %v275, %v362
  %v364 = vpop.f32.mrb[0].mxu0
  %365 = vmatprep.mubr.bf16.mxu0 0
  %366 = vmatmul.mubr.bf16.gmra.mrb[0].mxu0 %v247
  %v367 = vpop.f32.mrb[0].mxu0
  %v368 = vadd.f32 %v275, %v367
  %v369 = vpop.f32.mrb[0].mxu0
  %v370 = vpop.f32.mrb[0].mxu0
  %v371 = vadd.f32 %v275, %v370
  %v372 = vpop.f32.mrb[0].mxu0
  %373 = vmatprep.mubr.bf16.mxu0 0
  %374 = vmatmul.mubr.bf16.gmra.mrb[0].mxu0 %v248
  %v375 = vpop.f32.mrb[0].mxu0
  %v376 = vadd.f32 %v275, %v375
  %v377 = vpop.f32.mrb[0].mxu0
  %v378 = vpop.f32.mrb[0].mxu0
  %v379 = vadd.f32 %v275, %v378
  %v380 = vpop.f32.mrb[0].mxu0
  %381 = vmatprep.mubr.bf16.mxu0 0
  %382 = vmatmul.mubr.bf16.gmra.mrb[0].mxu0 %v249
  %v383 = vpop.f32.mrb[0].mxu0
  %v384 = vadd.f32 %v275, %v383
  %v385 = vpop.f32.mrb[0].mxu0
  %v386 = vpop.f32.mrb[0].mxu0
  %v387 = vadd.f32 %v275, %v386
  %v388 = vpop.f32.mrb[0].mxu0
  %389 = vmatprep.mubr.bf16.mxu0 0
  %390 = vmatmul.mubr.bf16.gmra.mrb[0].mxu0 %v250
  %v391 = vpop.f32.mrb[0].mxu0
  %v392 = vadd.f32 %v275, %v391
  %v393 = vpop.f32.mrb[0].mxu0
  %v394 = vpop.f32.mrb[0].mxu0
  %v395 = vadd.f32 %v275, %v394
  %v396 = vpop.f32.mrb[0].mxu0
  %397 = vmatprep.mubr.bf16.mxu0 0
  %398 = vmatmul.mubr.bf16.gmra.mrb[0].mxu0 %v251
  %v399 = vpop.f32.mrb[0].mxu0
  %v400 = vadd.f32 %v275, %v399
  %v401 = vpop.f32.mrb[0].mxu0
  %v402 = vpop.f32.mrb[0].mxu0
  %v403 = vadd.f32 %v275, %v402
  %v404 = vpop.f32.mrb[0].mxu0
  %405 = vmatprep.mubr.bf16.mxu0 0
  %406 = vmatmul.mubr.bf16.gmra.mrb[0].mxu0 %v252
  %v407 = vpop.f32.mrb[0].mxu0
  %v408 = vadd.f32 %v275, %v407
  %v409 = vpop.f32.mrb[0].mxu0
  %v410 = vpop.f32.mrb[0].mxu0
  %v411 = vadd.f32 %v275, %v410
  %v412 = vpop.f32.mrb[0].mxu0
  %413 = vmatprep.mubr.bf16.mxu0 0
  %414 = vmatmul.mubr.bf16.gmra.mrb[0].mxu0 %v253
  %v415 = vpop.f32.mrb[0].mxu0
  %v416 = vadd.f32 %v275, %v415
  %v417 = vpop.f32.mrb[0].mxu0
  %v418 = vpop.f32.mrb[0].mxu0
  %v419 = vadd.f32 %v275, %v418
  %v420 = vpop.f32.mrb[0].mxu0
  %421 = vdwg.mxu0
  %v422 = vmax.f32 %v360, 0.0
  %v423 = vmax.f32 %v363, 0.0
  %v424 = vmax.f32 %v368, 0.0
  %v425 = vmax.f32 %v371, 0.0
  %v426 = vmax.f32 %v376, 0.0
  %v427 = vmax.f32 %v379, 0.0
  %v428 = vmax.f32 %v384, 0.0
  %v429 = vmax.f32 %v387, 0.0
  %v430 = vmax.f32 %v392, 0.0
  %v431 = vmax.f32 %v395, 0.0
  %v432 = vmax.f32 %v400, 0.0
  %v433 = vmax.f32 %v403, 0.0
  %v434 = vmax.f32 %v408, 0.0
  %v435 = vmax.f32 %v411, 0.0
  %v436 = vmax.f32 %v416, 0.0
  %v437 = vmax.f32 %v419, 0.0
  %v438 = vpack.c.bf16 %v423, %v422
  %v439 = vpack.c.bf16 %v425, %v424
  %v440 = vpack.c.bf16 %v427, %v426
  %v441 = vpack.c.bf16 %v429, %v428
  %v442 = vpack.c.bf16 %v431, %v430
  %v443 = vpack.c.bf16 %v433, %v432
  %v444 = vpack.c.bf16 %v435, %v434
  %v445 = vpack.c.bf16 %v437, %v436
  %v446 = vld [vmem:[%s4] sm:$0xf]
  %v447 = vld [vmem:[%s4 + $0x4] sm:$0xf]
  %v448 = vld [vmem:[%s4 + $0x8] sm:$0xf]
  %v449 = vld [vmem:[%s4 + $0xc] sm:$0xf]
  %v450 = vld [vmem:[%s4 + $0x10] sm:$0xf]
  %v451 = vld [vmem:[%s4 + $0x14] sm:$0xf]
  %v452 = vld [vmem:[%s4 + $0x18] sm:$0xf]
  %v453 = vld [vmem:[%s4 + $0x1c] sm:$0xf]
  %v454 = vld [vmem:[%s4 + $0x20] sm:$0xf]
  %v455 = vld [vmem:[%s4 + $0x24] sm:$0xf]
  %v456 = vld [vmem:[%s4 + $0x28] sm:$0xf]
  %v457 = vld [vmem:[%s4 + $0x2c] sm:$0xf]
  %v458 = vld [vmem:[%s4 + $0x30] sm:$0xf]
  %v459 = vld [vmem:[%s4 + $0x34] sm:$0xf]
  %v460 = vld [vmem:[%s4 + $0x38] sm:$0xf]
  %v461 = vld [vmem:[%s4 + $0x3c] sm:$0xf]
  %v478 = vunpack.c.l.b16 %v446
  %v479 = vunpack.c.l.b16 %v447
  %v480 = vunpack.c.l.b16 %v448
  %v481 = vunpack.c.l.b16 %v449
  %v482 = vunpack.c.l.b16 %v450
  %v483 = vunpack.c.l.b16 %v451
  %v484 = vunpack.c.l.b16 %v452
  %v485 = vunpack.c.l.b16 %v453
  %v486 = vunpack.c.l.b16 %v454
  %v487 = vunpack.c.l.b16 %v455
  %v488 = vunpack.c.l.b16 %v456
  %v489 = vunpack.c.l.b16 %v457
  %v490 = vunpack.c.l.b16 %v458
  %v491 = vunpack.c.l.b16 %v459
  %v492 = vunpack.c.l.b16 %v460
  %v493 = vunpack.c.l.b16 %v461
  %v494 = vpack.c.b16 %v479, %v478
  %v495 = vpack.c.b16 %v481, %v480
  %v496 = vpack.c.b16 %v483, %v482
  %v497 = vpack.c.b16 %v485, %v484
  %v498 = vpack.c.b16 %v487, %v486
  %v499 = vpack.c.b16 %v489, %v488
  %v500 = vpack.c.b16 %v491, %v490
  %v501 = vpack.c.b16 %v493, %v492
  %510 = vmatprep.subr.bf16.mxu0 0
  %511 = vmatpush1.bf16.msra.mxu0 %v494
  %512 = vmatprep.subr.bf16.mxu0 0
  %513 = vmatpush1.bf16.msra.mxu0 %v495
  %514 = vmatprep.subr.bf16.mxu0 0
  %515 = vmatpush1.bf16.msra.mxu0 %v496
  %516 = vmatprep.subr.bf16.mxu0 0
  %517 = vmatpush1.bf16.msra.mxu0 %v497
  %518 = vmatprep.subr.bf16.mxu0 0
  %519 = vmatpush1.bf16.msra.mxu0 %v498
  %520 = vmatprep.subr.bf16.mxu0 0
  %521 = vmatpush1.bf16.msra.mxu0 %v499
  %522 = vmatprep.subr.bf16.mxu0 0
  %523 = vmatpush1.bf16.msra.mxu0 %v500
  %524 = vmatprep.subr.bf16.mxu0 0
  %525 = vmatpush1.bf16.msra.mxu0 %v501
  %526 = vmatprep.subr.bf16.mxu0 0
  %527 = vmatpush1.bf16.msra.mxu0 0
  %528 = vmatprep.subr.bf16.mxu0 0
  %529 = vmatpush1.bf16.msra.mxu0 0
  %530 = vmatprep.subr.bf16.mxu0 0
  %531 = vmatpush1.bf16.msra.mxu0 0
  %532 = vmatprep.subr.bf16.mxu0 0
  %533 = vmatpush1.bf16.msra.mxu0 0
  %534 = vmatprep.subr.bf16.mxu0 0
  %535 = vmatpush1.bf16.msra.mxu0 0
  %536 = vmatprep.subr.bf16.mxu0 0
  %537 = vmatpush1.bf16.msra.mxu0 0
  %538 = vmatprep.subr.bf16.mxu0 0
  %539 = vmatpush1.bf16.msra.mxu0 0
  %540 = vmatprep.subr.bf16.mxu0 0
  %541 = vmatpush1.bf16.msra.mxu0 0
  %542 = vmatprep.mubr.bf16.mxu0 0
  %543 = vmatmul.mubr.bf16.gmra.mrb[0].mxu0 %v438
  %v544 = vpop.f32.mrb[0].mxu0
  %v545 = vadd.f32 0.0, %v544
  %v546 = vpop.f32.mrb[0].mxu0
  %v547 = vpop.f32.mrb[0].mxu0
  %v548 = vadd.f32 0.0, %v547
  %v549 = vpop.f32.mrb[0].mxu0
  %550 = vmatprep.mubr.bf16.mxu0 0
  %551 = vmatmul.mubr.bf16.gmra.mrb[0].mxu0 %v439
  %v552 = vpop.f32.mrb[0].mxu0
  %v553 = vadd.f32 0.0, %v552
  %v554 = vpop.f32.mrb[0].mxu0
  %v555 = vpop.f32.mrb[0].mxu0
  %v556 = vadd.f32 0.0, %v555
  %v557 = vpop.f32.mrb[0].mxu0
  %558 = vmatprep.mubr.bf16.mxu0 0
  %559 = vmatmul.mubr.bf16.gmra.mrb[0].mxu0 %v440
  %v560 = vpop.f32.mrb[0].mxu0
  %v561 = vadd.f32 0.0, %v560
  %v562 = vpop.f32.mrb[0].mxu0
  %v563 = vpop.f32.mrb[0].mxu0
  %v564 = vadd.f32 0.0, %v563
  %v565 = vpop.f32.mrb[0].mxu0
  %566 = vmatprep.mubr.bf16.mxu0 0
  %567 = vmatmul.mubr.bf16.gmra.mrb[0].mxu0 %v441
  %v568 = vpop.f32.mrb[0].mxu0
  %v569 = vadd.f32 0.0, %v568
  %v570 = vpop.f32.mrb[0].mxu0
  %v571 = vpop.f32.mrb[0].mxu0
  %v572 = vadd.f32 0.0, %v571
  %v573 = vpop.f32.mrb[0].mxu0
  %574 = vmatprep.mubr.bf16.mxu0 0
  %575 = vmatmul.mubr.bf16.gmra.mrb[0].mxu0 %v442
  %v576 = vpop.f32.mrb[0].mxu0
  %v577 = vadd.f32 0.0, %v576
  %v578 = vpop.f32.mrb[0].mxu0
  %v579 = vpop.f32.mrb[0].mxu0
  %v580 = vadd.f32 0.0, %v579
  %v581 = vpop.f32.mrb[0].mxu0
  %582 = vmatprep.mubr.bf16.mxu0 0
  %583 = vmatmul.mubr.bf16.gmra.mrb[0].mxu0 %v443
  %v584 = vpop.f32.mrb[0].mxu0
  %v585 = vadd.f32 0.0, %v584
  %v586 = vpop.f32.mrb[0].mxu0
  %v587 = vpop.f32.mrb[0].mxu0
  %v588 = vadd.f32 0.0, %v587
  %v589 = vpop.f32.mrb[0].mxu0
  %590 = vmatprep.mubr.bf16.mxu0 0
  %591 = vmatmul.mubr.bf16.gmra.mrb[0].mxu0 %v444
  %v592 = vpop.f32.mrb[0].mxu0
  %v593 = vadd.f32 0.0, %v592
  %v594 = vpop.f32.mrb[0].mxu0
  %v595 = vpop.f32.mrb[0].mxu0
  %v596 = vadd.f32 0.0, %v595
  %v597 = vpop.f32.mrb[0].mxu0
  %598 = vmatprep.mubr.bf16.mxu0 0
  %599 = vmatmul.mubr.bf16.gmra.mrb[0].mxu0 %v445
  %v600 = vpop.f32.mrb[0].mxu0
  %v601 = vadd.f32 0.0, %v600
  %v602 = vpop.f32.mrb[0].mxu0
  %v603 = vpop.f32.mrb[0].mxu0
  %v604 = vadd.f32 0.0, %v603
  %v605 = vpop.f32.mrb[0].mxu0
  %606 = vdwg.mxu0
  %v607 = vpack.c.bf16 %v548, %v545
  %v608 = vpack.c.bf16 %v556, %v553
  %v609 = vpack.c.bf16 %v564, %v561
  %v610 = vpack.c.bf16 %v572, %v569
  %v611 = vpack.c.bf16 %v580, %v577
  %v612 = vpack.c.bf16 %v588, %v585
  %v613 = vpack.c.bf16 %v596, %v593
  %v614 = vpack.c.bf16 %v604, %v601
  %v623 = vunpack.c.l.b16 %v607
  %v624 = vunpack.c.h.b16 %v607
  %v625 = vunpack.c.l.b16 %v608
  %v626 = vunpack.c.h.b16 %v608
  %v627 = vunpack.c.l.b16 %v609
  %v628 = vunpack.c.h.b16 %v609
  %v629 = vunpack.c.l.b16 %v610
  %v630 = vunpack.c.h.b16 %v610
  %v631 = vunpack.c.l.b16 %v611
  %v632 = vunpack.c.h.b16 %v611
  %v633 = vunpack.c.l.b16 %v612
  %v634 = vunpack.c.h.b16 %v612
  %v635 = vunpack.c.l.b16 %v613
  %v636 = vunpack.c.h.b16 %v613
  %v637 = vunpack.c.l.b16 %v614
  %v638 = vunpack.c.h.b16 %v614
  %v639 = vpack.c.b16 %v623, %v623
  %v640 = vpack.c.b16 %v624, %v624
  %v641 = vpack.c.b16 %v625, %v625
  %v642 = vpack.c.b16 %v626, %v626
  %v643 = vpack.c.b16 %v627, %v627
  %v644 = vpack.c.b16 %v628, %v628
  %v645 = vpack.c.b16 %v629, %v629
  %v646 = vpack.c.b16 %v630, %v630
  %v647 = vpack.c.b16 %v631, %v631
  %v648 = vpack.c.b16 %v632, %v632
  %v649 = vpack.c.b16 %v633, %v633
  %v650 = vpack.c.b16 %v634, %v634
  %v651 = vpack.c.b16 %v635, %v635
  %v652 = vpack.c.b16 %v636, %v636
  %v653 = vpack.c.b16 %v637, %v637
  %v654 = vpack.c.b16 %v638, %v638
  %671 = vst [vmem:[%s5] sm:$0xf] %v639
  %672 = vst [vmem:[%s5 + $0x4] sm:$0xf] %v640
  %673 = vst [vmem:[%s5 + $0x8] sm:$0xf] %v641
  %674 = vst [vmem:[%s5 + $0xc] sm:$0xf] %v642
  %675 = vst [vmem:[%s5 + $0x10] sm:$0xf] %v643
  %676 = vst [vmem:[%s5 + $0x14] sm:$0xf] %v644
  %677 = vst [vmem:[%s5 + $0x18] sm:$0xf] %v645
  %678 = vst [vmem:[%s5 + $0x1c] sm:$0xf] %v646
  %679 = vst [vmem:[%s5 + $0x20] sm:$0xf] %v647
  %680 = vst [vmem:[%s5 + $0x24] sm:$0xf] %v648
  %681 = vst [vmem:[%s5 + $0x28] sm:$0xf] %v649
  %682 = vst [vmem:[%s5 + $0x2c] sm:$0xf] %v650
  %683 = vst [vmem:[%s5 + $0x30] sm:$0xf] %v651
  %684 = vst [vmem:[%s5 + $0x34] sm:$0xf] %v652
  %685 = vst [vmem:[%s5 + $0x38] sm:$0xf] %v653
  %686 = vst [vmem:[%s5 + $0x3c] sm:$0xf] %v654
  // Predicated region
  $region22: #{gcn_net_forward.2} parent=0 // pred_check
    _
  $region23: #{gcn_net_forward.2} parent=0 // pred_check_branch
    %688 = sbr.rel (0) target = $region25
  $region24: #{gcn_net_forward.2} parent=0 // pred_region
    _
  $region25: #{gcn_net_forward.2} parent=0 // pred_fallthru
    _
  // Predicated region
  $region26: #{gcn_net_forward.2} parent=0 // pred_check
    _
  $region27: #{gcn_net_forward.2} parent=0 // pred_check_branch
    %690 = sbr.rel (0) target = $region29
  $region28: #{gcn_net_forward.2} parent=0 // pred_region
    _
  $region29: #{gcn_net_forward.2} parent=0 // pred_fallthru
    _

</llo_original>
